<compile_context>
chip_gen: v7x
topology: tpu7x:2x2x1
jax: 0.10.0
libtpu: 0.0.40
codegen_flags: <defaults>
</compile_context>

<pallas_src>
import functools

import jax
import jax.numpy as jnp
from jax.experimental import pallas as pl
from jax.experimental.pallas import tpu as pltpu


# 48 MiB: enough for the double-buffered 8 MiB weight slabs (cl1/ce0/ce1) + whole-image
# activation blocks, and below v7x's 64 MiB/TC physical VMEM.
VMEM_LIMIT = 48 * 1024 * 1024
# Cap on the per-dot M (= rows * OW) to bound in-kernel temporaries; keeps M >= 256 for
# every layer where it matters.
MAX_ROWS_M = 1024


def _cparams(semantics):
    return pltpu.CompilerParams(dimension_semantics=semantics,
                                vmem_limit_bytes=VMEM_LIMIT)


def _apply_act(y, act):
    if act == "relu":
        return jnp.maximum(y, 0.0)
    if act == "elu":
        # ELU(alpha=1): x if x > 0 else exp(x) - 1   (computed in f32)
        return jnp.where(y > 0.0, y, jnp.exp(jnp.minimum(y, 0.0)) - 1.0)
    return y


def _row_chunk(oh, ow):
    """Output-row chunk so each matmul has M = rows*ow <= MAX_ROWS_M."""
    return max(1, min(oh, MAX_ROWS_M // max(ow, 1)))


# --------------------------------------------------------------------------- kernels
def _conv_kernel(x_ref, w_ref, b_ref, *out_refs, kh, kw, cin, act, with_stats, tb):
    """Stride-1 KHxKW 'valid' conv over one (padded) image.

    x_ref: (1, HP, WP, CIN) bf16
    w_ref: (KH, KW*CIN, COUT) bf16, K laid out kx-major-within-ky
    b_ref: (1, COUT) f32
    out_refs: y (1, OH, OW, COUT)  [, sum (1, COUT) f32, sumsq (1, COUT) f32]
    """
    if with_stats:
        o_ref, s_ref, q_ref = out_refs
    else:
        (o_ref,) = out_refs
    oh, ow, cout = o_ref.shape[1], o_ref.shape[2], o_ref.shape[3]
    bias = b_ref[...].astype(jnp.float32)                       # (1, COUT)
    fuse_kw = (kw > 1) and (cin % 64 == 0)                      # lane-aligned concat only

    s_tot = q_tot = None
    if with_stats:
        s_tot = jnp.zeros((1, cout), jnp.float32)
        q_tot = jnp.zeros((1, cout), jnp.float32)

    for r0 in range(0, oh, tb):
        rb = min(tb, oh - r0)
        acc = jnp.zeros((rb * ow, cout), jnp.float32)
        for ky in range(kh):
            if fuse_kw:
                taps = [x_ref[0, r0 + ky:r0 + ky + rb, kx:kx + ow, :]
                        for kx in range(kw)]
                patch = jnp.concatenate(taps, axis=-1)           # (rb, OW, KW*CIN)
                acc = acc + jnp.dot(patch.reshape(rb * ow, kw * cin), w_ref[ky],
                                    preferred_element_type=jnp.float32)
            else:
                for kx in range(kw):
                    a = x_ref[0, r0 + ky:r0 + ky + rb, kx:kx + ow, :]
                    acc = acc + jnp.dot(a.reshape(rb * ow, cin),
                                        w_ref[ky, kx * cin:(kx + 1) * cin, :],
                                        preferred_element_type=jnp.float32)
        y = acc + bias                                           # (M, COUT) f32
        if with_stats:
            s_tot = s_tot + jnp.sum(y, axis=0, keepdims=True)
            q_tot = q_tot + jnp.sum(y * y, axis=0, keepdims=True)
        o_ref[0, r0:r0 + rb] = (_apply_act(y, act)
                                .reshape(rb, ow, cout).astype(o_ref.dtype))

    if with_stats:
        @pl.when(pl.program_id(0) == 0)
        def _():
            s_ref[...] = jnp.zeros_like(s_ref)
            q_ref[...] = jnp.zeros_like(q_ref)
        s_ref[...] += s_tot
        q_ref[...] += q_tot


def _deconv_kernel(x_ref, w_ref, b_ref, o_ref, *, cin, act, tb):
    """ConvTranspose2d(k=4, s=2, p=1) via sub-pixel phases over one (padded) image.

    x_ref: (1, H+2, W+2, CIN) bf16
    w_ref: (4, 4*CIN, COUT) bf16; phase = 2*py + px, K laid out (a, b, cin)
    b_ref: (1, COUT) f32
    o_ref: (1, H, 2, W, 2*COUT) — axis 2 is the output-row phase py, last axis is
           [px=0 channels | px=1 channels]; a plain (free) reshape outside yields
           (N, 2H, 2W, COUT).
    """
    h, w = o_ref.shape[1], o_ref.shape[3]
    cout = o_ref.shape[4] // 2
    bias = b_ref[...].astype(jnp.float32)
    fuse = cin % 64 == 0

    for r0 in range(0, h, tb):
        rb = min(tb, h - r0)
        for py in range(2):
            cols = []
            for px in range(2):
                if fuse:
                    taps = [x_ref[0, r0 + py + a:r0 + py + a + rb,
                                  px + b:px + b + w, :]
                            for a in range(2) for b in range(2)]
                    patch = jnp.concatenate(taps, axis=-1).reshape(rb * w, 4 * cin)
                    acc = jnp.dot(patch, w_ref[2 * py + px],
                                  preferred_element_type=jnp.float32)
                else:
                    acc = jnp.zeros((rb * w, cout), jnp.float32)
                    for a in range(2):
                        for b in range(2):
                            av = x_ref[0, r0 + py + a:r0 + py + a + rb,
                                       px + b:px + b + w, :]
                            wk = w_ref[2 * py + px,
                                       (2 * a + b) * cin:(2 * a + b + 1) * cin, :]
                            acc = acc + jnp.dot(av.reshape(rb * w, cin), wk,
                                                preferred_element_type=jnp.float32)
                cols.append(_apply_act(acc + bias, act))
            slab = jnp.concatenate(cols, axis=-1)                # (rb*W, 2*COUT) f32
            o_ref[0, r0:r0 + rb, py] = (slab.reshape(rb, w, 2 * cout)
                                        .astype(o_ref.dtype))


def _scale_act_kernel(y_ref, scale_ref, off_ref, o_ref, *, act):
    """Fused BatchNorm affine + activation over one image."""
    y = y_ref[0].astype(jnp.float32)                             # (OH, OW, C)
    z = y * scale_ref[...] + off_ref[...]                        # (1, C) broadcast
    o_ref[0] = _apply_act(z, act).astype(o_ref.dtype)


# --------------------------------------------------------------------- conv wrappers
def conv2d_s1(x_pad, w_slab, bias, act, kh, kw, out_dtype, with_stats=False):
    """Stride-1 'valid' conv.  x_pad: (N, Hp, Wp, C) NHWC bf16 (already padded),
    w_slab: (KH, KW*C, OC) bf16.  Returns (N, Hp-KH+1, Wp-KW+1, OC)
    (+ per-channel sum/sumsq when with_stats)."""
    n, hp, wp, cin = x_pad.shape
    cout = w_slab.shape[-1]
    assert w_slab.shape == (kh, kw * cin, cout)
    oh, ow = hp - kh + 1, wp - kw + 1
    tb = _row_chunk(oh, ow)
    bias2 = bias.reshape(1, cout).astype(jnp.float32)

    out_shape = [jax.ShapeDtypeStruct((n, oh, ow, cout), out_dtype)]
    out_specs = [pl.BlockSpec((1, oh, ow, cout), lambda i: (i, 0, 0, 0))]
    if with_stats:
        out_shape += [jax.ShapeDtypeStruct((1, cout), jnp.float32)] * 2
        out_specs += [pl.BlockSpec((1, cout), lambda i: (0, 0))] * 2

    flops = 2 * n * oh * ow * kh * kw * cin * cout
    bytes_accessed = int(x_pad.size * x_pad.dtype.itemsize
                         + w_slab.size * w_slab.dtype.itemsize
                         + n * oh * ow * cout * jnp.dtype(out_dtype).itemsize)
    trans = n * oh * ow * cout if act == "elu" else 0

    return pl.pallas_call(
        functools.partial(_conv_kernel, kh=kh, kw=kw, cin=cin, act=act,
                          with_stats=with_stats, tb=tb),
        out_shape=tuple(out_shape) if with_stats else out_shape[0],
        grid_spec=pltpu.PrefetchScalarGridSpec(
            num_scalar_prefetch=0,
            grid=(n,),
            in_specs=[pl.BlockSpec((1, hp, wp, cin), lambda i: (i, 0, 0, 0)),
                      pl.BlockSpec((kh, kw * cin, cout), lambda i: (0, 0, 0)),
                      pl.BlockSpec((1, cout), lambda i: (0, 0))],
            out_specs=tuple(out_specs) if with_stats else out_specs[0],
        ),
        compiler_params=_cparams(("arbitrary",) if with_stats else ("parallel",)),
        cost_estimate=pl.CostEstimate(flops=flops, transcendentals=trans,
                                      bytes_accessed=bytes_accessed),
    )(x_pad, w_slab, bias2)


def scale_act(y, scale, offset, act, out_dtype):
    """y * scale + offset, then activation (per-channel affine), NHWC."""
    n, oh, ow, c = y.shape
    return pl.pallas_call(
        functools.partial(_scale_act_kernel, act=act),
        out_shape=jax.ShapeDtypeStruct((n, oh, ow, c), out_dtype),
        grid_spec=pltpu.PrefetchScalarGridSpec(
            num_scalar_prefetch=0,
            grid=(n,),
            in_specs=[pl.BlockSpec((1, oh, ow, c), lambda i: (i, 0, 0, 0)),
                      pl.BlockSpec((1, c), lambda i: (0, 0)),
                      pl.BlockSpec((1, c), lambda i: (0, 0))],
            out_specs=pl.BlockSpec((1, oh, ow, c), lambda i: (i, 0, 0, 0)),
        ),
        compiler_params=_cparams(("parallel",)),
        cost_estimate=pl.CostEstimate(
            flops=2 * n * oh * ow * c, transcendentals=0,
            bytes_accessed=int(y.size * y.dtype.itemsize
                               + n * oh * ow * c * jnp.dtype(out_dtype).itemsize)),
    )(y, scale.reshape(1, c).astype(jnp.float32),
      offset.reshape(1, c).astype(jnp.float32))


def conv_down(x, w, b, act, bn=None, out_dtype=jnp.bfloat16):
    """Conv2d(k=4, s=2, p=1) [+ BatchNorm(batch stats)] + activation (NHWC).

    The stride-2 4x4 conv is a stride-1 2x2 conv over a space-to-depth view of the
    padded input (effective channel = (dy, dx, cin))."""
    n, h, wd, cin = x.shape
    oc = w.shape[0]
    assert h % 2 == 0 and wd % 2 == 0
    xp = jnp.pad(x, ((0, 0), (1, 1), (1, 1), (0, 0)))
    hs, ws = (h + 2) // 2, (wd + 2) // 2
    xs = (xp.reshape(n, hs, 2, ws, 2, cin)
            .transpose(0, 1, 3, 2, 4, 5)
            .reshape(n, hs, ws, 4 * cin)
            .astype(jnp.bfloat16))
    w_slab = (jnp.transpose(w, (2, 3, 1, 0))        # (ky, kx, ic, oc)
                .reshape(2, 2, 2, 2, cin, oc)       # (A, dy, B, dx, ic, oc)
                .transpose(0, 2, 1, 3, 4, 5)        # (A, B, dy, dx, ic, oc)
                .reshape(2, 8 * cin, oc)
                .astype(jnp.bfloat16))
    if bn is None:
        return conv2d_s1(xs, w_slab, b, act, 2, 2, out_dtype)
    # Conv (+bias) -> BatchNorm(batch statistics, fused into the conv epilogue) -> act
    y, s, q = conv2d_s1(xs, w_slab, b, "none", 2, 2, jnp.bfloat16, with_stats=True)
    gamma, beta = bn
    cnt = float(n * (h // 2) * (wd // 2))
    mean = s[0] / cnt
    var = jnp.maximum(q[0] / cnt - mean * mean, 0.0)   # biased var, clamped >= 0
    scale = gamma * jax.lax.rsqrt(var + 1e-5)
    offset = beta - mean * scale
    return scale_act(y, scale, offset, act, out_dtype)


def conv3x3_s1(x, w, bias, act, out_dtype):
    """Conv2d(k=3, s=1, p=1) + activation.  w: (OC, IC, 3, 3), x NHWC."""
    n, h, wd, cin = x.shape
    oc = w.shape[0]
    xp = jnp.pad(x.astype(jnp.bfloat16), ((0, 0), (1, 1), (1, 1), (0, 0)))
    w_slab = (jnp.transpose(w, (2, 3, 1, 0)).reshape(3, 3 * cin, oc)
              .astype(jnp.bfloat16))
    return conv2d_s1(xp, w_slab, bias, act, 3, 3, out_dtype)


def _deconv_phase_weights(w_t):
    """(Cin, Cout, 4, 4) -> (4, 4*Cin, Cout); phase = 2*py + px, K order (a, b, cin)."""
    phases = []
    for py in range(2):
        for px in range(2):
            blocks = [w_t[:, :, 3 - py - 2 * a, 3 - px - 2 * b]
                      for a in range(2) for b in range(2)]      # each (Cin, Cout)
            phases.append(jnp.concatenate(blocks, axis=0))      # (4*Cin, Cout)
    return jnp.stack(phases, axis=0)


def deconv2x(x, w_t, bias, act, out_dtype=jnp.bfloat16):
    """ConvTranspose2d(k=4, s=2, p=1) + activation via sub-pixel phase decomposition.

    x: (N, H, W, Cin) NHWC, w_t: (Cin, Cout, 4, 4) (PyTorch ConvTranspose2d layout).
    Output is written phase-interleaved as (N, H, 2, W, 2*Cout); a free row-major
    reshape yields (N, 2H, 2W, Cout) without an extra XLA interleave pass."""
    n, h, w, cin = x.shape
    cout = w_t.shape[1]
    xp = jnp.pad(x.astype(jnp.bfloat16), ((0, 0), (1, 1), (1, 1), (0, 0)))
    wph = _deconv_phase_weights(w_t).astype(jnp.bfloat16)       # (4, 4*Cin, Cout)
    bias2 = bias.reshape(1, cout).astype(jnp.float32)
    tb = _row_chunk(h, w)

    flops = 2 * n * h * w * 16 * cin * cout
    bytes_accessed = int(xp.size * xp.dtype.itemsize + wph.size * wph.dtype.itemsize
                         + n * 4 * h * w * cout * jnp.dtype(out_dtype).itemsize)
    out = pl.pallas_call(
        functools.partial(_deconv_kernel, cin=cin, act=act, tb=tb),
        out_shape=jax.ShapeDtypeStruct((n, h, 2, w, 2 * cout), out_dtype),
        grid_spec=pltpu.PrefetchScalarGridSpec(
            num_scalar_prefetch=0,
            grid=(n,),
            in_specs=[pl.BlockSpec((1, h + 2, w + 2, cin), lambda i: (i, 0, 0, 0)),
                      pl.BlockSpec((4, 4 * cin, cout), lambda i: (0, 0, 0)),
                      pl.BlockSpec((1, cout), lambda i: (0, 0))],
            out_specs=pl.BlockSpec((1, h, 2, w, 2 * cout),
                                   lambda i: (i, 0, 0, 0, 0)),
        ),
        compiler_params=_cparams(("parallel",)),
        cost_estimate=pl.CostEstimate(
            flops=flops,
            transcendentals=n * 4 * h * w * cout if act == "elu" else 0,
            bytes_accessed=bytes_accessed),
    )(xp, wph, bias2)
    return out.reshape(n, 2 * h, 2 * w, cout)                   # free (contiguous) reshape


# ----------------------------------------------------------------------- CoarseNet
def init_params(key, in_ch=3, out_ch=3):
    def conv_p(k, oc, ic, ks):
        k1, k2 = jax.random.split(k)
        return {"w": jax.random.normal(k1, (oc, ic, ks, ks), jnp.float32) * 0.05,
                "b": jax.random.normal(k2, (oc,), jnp.float32) * 0.01}

    def convT_p(k, ic, oc, ks):
        k1, k2 = jax.random.split(k)
        return {"w": jax.random.normal(k1, (ic, oc, ks, ks), jnp.float32) * 0.05,
                "b": jax.random.normal(k2, (oc,), jnp.float32) * 0.01}

    def bn_p(oc):
        return {"gamma": jnp.ones((oc,), jnp.float32),
                "beta": jnp.zeros((oc,), jnp.float32)}

    ks = jax.random.split(key, 12)
    p = {}
    p["cl0"] = conv_p(ks[0], 64, in_ch, 4)
    p["cbl0"] = {**conv_p(ks[1], 128, 64, 4), **bn_p(128)}
    p["cbl1"] = {**conv_p(ks[2], 256, 128, 4), **bn_p(256)}
    p["cbl2"] = {**conv_p(ks[3], 512, 256, 4), **bn_p(512)}
    p["cl1"] = conv_p(ks[4], 512, 512, 4)
    p["ce0"] = convT_p(ks[5], 512, 512, 4)
    p["ce1"] = convT_p(ks[6], 1024, 256, 4)
    p["ce2"] = convT_p(ks[7], 512, 128, 4)
    p["ce3"] = convT_p(ks[8], 256, 64, 4)
    p["ce4"] = convT_p(ks[9], 128, 64, 4)
    p["ce5"] = convT_p(ks[10], 64, 64, 3)
    p["final"] = conv_p(ks[11], out_ch, 64, 3)
    return p


def coarse_net(x_nchw, p):
    x = jnp.transpose(x_nchw, (0, 2, 3, 1)).astype(jnp.bfloat16)  # NCHW -> NHWC, bf16

    def cl(h, pp):    # Conv(k4, s2, p1) -> ReLU
        return conv_down(h, pp["w"], pp["b"], "relu")

    def cbl(h, pp):   # Conv(k4, s2, p1) -> BN(batch stats) -> ReLU
        return conv_down(h, pp["w"], pp["b"], "relu",
                         bn=(pp["gamma"], pp["beta"]))

    def ce(h, pp):    # ConvTranspose(k4, s2, p1) -> ELU
        return deconv2x(h, pp["w"], pp["b"], "elu")

    def expand(x1, x2, pp):
        dx = x1.shape[1] - x2.shape[1]
        dy = x1.shape[2] - x2.shape[2]
        if dx or dy:   # F.pad(x2, (dx//2, dy//2, dx//2, dy//2)) on NCHW
            x2 = jnp.pad(x2, ((0, 0), (dx // 2, dy // 2),
                              (dx // 2, dy // 2), (0, 0)))
        h = jnp.concatenate([x2, x1], axis=-1)   # torch.cat((x2, x1), dim=1)
        return ce(h, pp)

    out = cl(x, p["cl0"])
    out2 = cbl(out, p["cbl0"])
    out3 = cbl(out2, p["cbl1"])
    out4 = cbl(out3, p["cbl2"])
    out5 = cl(out4, p["cl1"])
    in0 = ce(out5, p["ce0"])
    in1 = expand(out4, in0, p["ce1"])
    in2 = expand(out3, in1, p["ce2"])
    in3 = expand(out2, in2, p["ce3"])
    in4 = expand(out, in3, p["ce4"])
    # ce5: ConvTranspose2d(k=3, s=1, p=1) == Conv2d with flipped+transposed kernel, then ELU
    w5 = jnp.transpose(jnp.flip(p["ce5"]["w"], axis=(2, 3)), (1, 0, 2, 3))
    f = conv3x3_s1(in4, w5, p["ce5"]["b"], "elu", jnp.bfloat16)
    f = conv3x3_s1(f, p["final"]["w"], p["final"]["b"], "none", jnp.float32)
    # TODO(synk): final 3-channel store is lane-masked (cout=3); absolute cost is ~50 KB.
    return jnp.transpose(f, (0, 3, 1, 2)).astype(jnp.float32)   # back to NCHW


# -------------------------------------------------------- numerical self-checks vs lax
def _selfcheck(key):
    ks = jax.random.split(key, 8)
    bf = lambda a: a.astype(jnp.bfloat16).astype(jnp.float32)
    P = jax.lax.Precision.HIGHEST
    DN = ("NHWC", "HWIO", "NHWC")

    def close(a, b, tol=2e-2):
        err = float(jnp.max(jnp.abs(a.astype(jnp.float32) - b)))
        assert err < tol, f"self-check failed, max abs err = {err}"

    # Conv2d(k4,s2,p1) + ReLU  (both the small-cin fallback and the fused-K path)
    for cin, cout in ((3, 16), (16, 64)):
        x = jax.random.normal(ks[0], (1, 8, 8, cin), jnp.float32)
        w = jax.random.normal(ks[1], (cout, cin, 4, 4), jnp.float32) * 0.05
        b = jax.random.normal(ks[2], (cout,), jnp.float32) * 0.01
        got = conv_down(x, w, b, "relu", out_dtype=jnp.float32)
        ref = jax.lax.conv_general_dilated(
            bf(x), jnp.transpose(bf(w), (2, 3, 1, 0)), (2, 2), ((1, 1), (1, 1)),
            dimension_numbers=DN, precision=P) + b
        close(got, jnp.maximum(ref, 0.0))

    # ConvTranspose2d(k4,s2,p1) + ELU
    x = jax.random.normal(ks[3], (1, 4, 4, 64), jnp.float32)
    wt = jax.random.normal(ks[4], (64, 64, 4, 4), jnp.float32) * 0.05
    b = jax.random.normal(ks[5], (64,), jnp.float32) * 0.01
    got = deconv2x(x, wt, b, "elu", out_dtype=jnp.float32)
    ref = jax.lax.conv_general_dilated(
        bf(x), jnp.transpose(jnp.flip(bf(wt), (2, 3)), (2, 3, 0, 1)),
        (1, 1), ((2, 2), (2, 2)), lhs_dilation=(2, 2),
        dimension_numbers=DN, precision=P) + b
    close(got, jax.nn.elu(ref))

    # Conv2d(k3,s1,p1)
    x = jax.random.normal(ks[6], (1, 8, 8, 64), jnp.float32)
    w = jax.random.normal(ks[7], (64, 64, 3, 3), jnp.float32) * 0.05
    got = conv3x3_s1(x, w, jnp.zeros((64,), jnp.float32), "none", jnp.float32)
    ref = jax.lax.conv_general_dilated(
        bf(x), jnp.transpose(bf(w), (2, 3, 1, 0)), (1, 1), ((1, 1), (1, 1)),
        dimension_numbers=DN, precision=P)
    close(got, ref)


if __name__ == "__main__":
    key = jax.random.PRNGKey(0)
    kx, kp, kc = jax.random.split(key, 3)

    # Validate the conv / stride-2 conv / transposed-conv building blocks numerically.
    _selfcheck(kc)

    # NCHW input; spatial must be a multiple of 32 for the 5x downsampling path.
    x = jax.random.normal(kx, (2, 3, 64, 64), jnp.float32)
    params = init_params(kp, in_ch=3, out_ch=3)

    y = jax.jit(coarse_net)(x, params)
    jax.block_until_ready(y)
    assert y.shape == (2, 3, 64, 64), y.shape
    assert bool(jnp.all(jnp.isfinite(y)))
    print("KERNEL_OK")
</pallas_src>

<mosaic_0001>
module attributes {stable_mosaic.version = 11 : i64} {
  func.func @_conv_kernel(%arg0: i32, %arg1: memref<1x5x5x12xbf16, #tpu.memory_space<vmem>>, %arg2: memref<2x24x16xbf16, #tpu.memory_space<vmem>>, %arg3: memref<1x16xf32, #tpu.memory_space<vmem>>, %arg4: memref<1x4x4x16xf32, #tpu.memory_space<vmem>>) attributes {dimension_semantics = [#tpu.dimension_semantics<parallel>], iteration_bounds = array<i64: 1>, scalar_prefetch = 0 : i64, scratch_operands = 0 : i64, tpu.core_type = #tpu.core_type<tc>, window_params = [{transform_indices = @transform_0, window_bounds = array<i64: 1, 5, 5, 12>}, {pipeline_mode = #tpu.pipeline_mode<synchronous>, transform_indices = @transform_1, window_bounds = array<i64: 2, 24, 16>}, {pipeline_mode = #tpu.pipeline_mode<synchronous>, transform_indices = @transform_2, window_bounds = array<i64: 1, 16>}, {transform_indices = @transform_3, window_bounds = array<i64: 1, 4, 4, 16>}]} {
    %c0 = arith.constant 0 : index
    %c0_0 = arith.constant 0 : index
    %0 = vector.load %arg3[%c0, %c0_0] : memref<1x16xf32, #tpu.memory_space<vmem>>, vector<1x16xf32>
    %cst = arith.constant 0.000000e+00 : f32
    %1 = vector.broadcast %cst : f32 to vector<16x16xf32>
    %c0_1 = arith.constant 0 : index
    %c0_2 = arith.constant 0 : index
    %c0_3 = arith.constant 0 : index
    %c0_4 = arith.constant 0 : index
    %2 = vector.load %arg1[%c0_1, %c0_2, %c0_3, %c0_4] : memref<1x5x5x12xbf16, #tpu.memory_space<vmem>>, vector<1x4x4x12xbf16>
    %3 = vector.shape_cast %2 : vector<1x4x4x12xbf16> to vector<4x4x12xbf16>
    %4 = vector.shape_cast %3 : vector<4x4x12xbf16> to vector<16x12xbf16>
    %c0_5 = arith.constant 0 : index
    %c0_6 = arith.constant 0 : index
    %c0_7 = arith.constant 0 : index
    %5 = vector.load %arg2[%c0_5, %c0_6, %c0_7] : memref<2x24x16xbf16, #tpu.memory_space<vmem>>, vector<1x12x16xbf16>
    %6 = vector.shape_cast %5 : vector<1x12x16xbf16> to vector<12x16xbf16>
    %cst_8 = arith.constant dense<0.000000e+00> : vector<16x16xf32>
    %7 = tpu.matmul %4, %6, %cst_8 {dimension_numbers = #tpu.dot_dimension_numbers<[1], [0], [0], [1], [0, 0, 1, 1], [], []>} : vector<16x12xbf16>, vector<12x16xbf16>, vector<16x16xf32> -> vector<16x16xf32>
    %8 = arith.addf %1, %7 : vector<16x16xf32>
    %c0_9 = arith.constant 0 : index
    %c0_10 = arith.constant 0 : index
    %c1 = arith.constant 1 : index
    %c0_11 = arith.constant 0 : index
    %9 = vector.load %arg1[%c0_9, %c0_10, %c1, %c0_11] : memref<1x5x5x12xbf16, #tpu.memory_space<vmem>>, vector<1x4x4x12xbf16>
    %10 = vector.shape_cast %9 : vector<1x4x4x12xbf16> to vector<4x4x12xbf16>
    %11 = vector.shape_cast %10 : vector<4x4x12xbf16> to vector<16x12xbf16>
    %c0_12 = arith.constant 0 : index
    %c12 = arith.constant 12 : index
    %c0_13 = arith.constant 0 : index
    %12 = vector.load %arg2[%c0_12, %c12, %c0_13] : memref<2x24x16xbf16, #tpu.memory_space<vmem>>, vector<1x12x16xbf16>
    %13 = vector.shape_cast %12 : vector<1x12x16xbf16> to vector<12x16xbf16>
    %cst_14 = arith.constant dense<0.000000e+00> : vector<16x16xf32>
    %14 = tpu.matmul %11, %13, %cst_14 {dimension_numbers = #tpu.dot_dimension_numbers<[1], [0], [0], [1], [0, 0, 1, 1], [], []>} : vector<16x12xbf16>, vector<12x16xbf16>, vector<16x16xf32> -> vector<16x16xf32>
    %15 = arith.addf %8, %14 : vector<16x16xf32>
    %c0_15 = arith.constant 0 : index
    %c1_16 = arith.constant 1 : index
    %c0_17 = arith.constant 0 : index
    %c0_18 = arith.constant 0 : index
    %16 = vector.load %arg1[%c0_15, %c1_16, %c0_17, %c0_18] : memref<1x5x5x12xbf16, #tpu.memory_space<vmem>>, vector<1x4x4x12xbf16>
    %17 = vector.shape_cast %16 : vector<1x4x4x12xbf16> to vector<4x4x12xbf16>
    %18 = vector.shape_cast %17 : vector<4x4x12xbf16> to vector<16x12xbf16>
    %c1_19 = arith.constant 1 : index
    %c0_20 = arith.constant 0 : index
    %c0_21 = arith.constant 0 : index
    %19 = vector.load %arg2[%c1_19, %c0_20, %c0_21] : memref<2x24x16xbf16, #tpu.memory_space<vmem>>, vector<1x12x16xbf16>
    %20 = vector.shape_cast %19 : vector<1x12x16xbf16> to vector<12x16xbf16>
    %cst_22 = arith.constant dense<0.000000e+00> : vector<16x16xf32>
    %21 = tpu.matmul %18, %20, %cst_22 {dimension_numbers = #tpu.dot_dimension_numbers<[1], [0], [0], [1], [0, 0, 1, 1], [], []>} : vector<16x12xbf16>, vector<12x16xbf16>, vector<16x16xf32> -> vector<16x16xf32>
    %22 = arith.addf %15, %21 : vector<16x16xf32>
    %c0_23 = arith.constant 0 : index
    %c1_24 = arith.constant 1 : index
    %c1_25 = arith.constant 1 : index
    %c0_26 = arith.constant 0 : index
    %23 = vector.load %arg1[%c0_23, %c1_24, %c1_25, %c0_26] : memref<1x5x5x12xbf16, #tpu.memory_space<vmem>>, vector<1x4x4x12xbf16>
    %24 = vector.shape_cast %23 : vector<1x4x4x12xbf16> to vector<4x4x12xbf16>
    %25 = vector.shape_cast %24 : vector<4x4x12xbf16> to vector<16x12xbf16>
    %c1_27 = arith.constant 1 : index
    %c12_28 = arith.constant 12 : index
    %c0_29 = arith.constant 0 : index
    %26 = vector.load %arg2[%c1_27, %c12_28, %c0_29] : memref<2x24x16xbf16, #tpu.memory_space<vmem>>, vector<1x12x16xbf16>
    %27 = vector.shape_cast %26 : vector<1x12x16xbf16> to vector<12x16xbf16>
    %cst_30 = arith.constant dense<0.000000e+00> : vector<16x16xf32>
    %28 = tpu.matmul %25, %27, %cst_30 {dimension_numbers = #tpu.dot_dimension_numbers<[1], [0], [0], [1], [0, 0, 1, 1], [], []>} : vector<16x12xbf16>, vector<12x16xbf16>, vector<16x16xf32> -> vector<16x16xf32>
    %29 = arith.addf %22, %28 : vector<16x16xf32>
    %30 = vector.broadcast %0 : vector<1x16xf32> to vector<16x16xf32>
    %31 = arith.addf %29, %30 : vector<16x16xf32>
    %cst_31 = arith.constant 0.000000e+00 : f32
    %32 = vector.broadcast %cst_31 : f32 to vector<16x16xf32>
    %33 = arith.maximumf %31, %32 : vector<16x16xf32>
    %34 = vector.shape_cast %33 : vector<16x16xf32> to vector<4x4x16xf32>
    %c0_32 = arith.constant 0 : index
    %c0_33 = arith.constant 0 : index
    %c0_34 = arith.constant 0 : index
    %c0_35 = arith.constant 0 : index
    %35 = vector.load %arg4[%c0_32, %c0_33, %c0_34, %c0_35] : memref<1x4x4x16xf32, #tpu.memory_space<vmem>>, vector<1x4x4x16xf32>
    %36 = vector.shape_cast %35 : vector<1x4x4x16xf32> to vector<4x4x16xf32>
    %37 = vector.shape_cast %34 : vector<4x4x16xf32> to vector<1x4x4x16xf32>
    tpu.vector_store %arg4[%c0_32, %c0_33, %c0_34, %c0_35], %37 {strides = array<i32>} : memref<1x4x4x16xf32, #tpu.memory_space<vmem>>, vector<1x4x4x16xf32>,
    return
  }
  func.func @transform_0(%arg0: i32) -> (i32, i32, i32, i32) {
    %c0_i32 = arith.constant 0 : i32
    %c0_i32_0 = arith.constant 0 : i32
    %c0_i32_1 = arith.constant 0 : i32
    %c0_i32_2 = arith.constant 0 : i32
    return %arg0, %c0_i32, %c0_i32_0, %c0_i32_1 : i32, i32, i32, i32
  }
  func.func @transform_1(%arg0: i32) -> (i32, i32, i32) {
    %c0_i32 = arith.constant 0 : i32
    %c0_i32_0 = arith.constant 0 : i32
    %c0_i32_1 = arith.constant 0 : i32
    %c0_i32_2 = arith.constant 0 : i32
    return %c0_i32, %c0_i32_0, %c0_i32_1 : i32, i32, i32
  }
  func.func @transform_2(%arg0: i32) -> (i32, i32) {
    %c0_i32 = arith.constant 0 : i32
    %c0_i32_0 = arith.constant 0 : i32
    %c0_i32_1 = arith.constant 0 : i32
    return %c0_i32, %c0_i32_0 : i32, i32
  }
  func.func @transform_3(%arg0: i32) -> (i32, i32, i32, i32) {
    %c0_i32 = arith.constant 0 : i32
    %c0_i32_0 = arith.constant 0 : i32
    %c0_i32_1 = arith.constant 0 : i32
    %c0_i32_2 = arith.constant 0 : i32
    return %arg0, %c0_i32, %c0_i32_0, %c0_i32_1 : i32, i32, i32, i32
  }
}

</mosaic_0001>

<llo_original>
// kernel: tpu_custom_call.1
$region0: #{tpu_custom_call.1}
  #allocation0 [shape = 'u32[]', space=smem, size = 0x4, offset = 0x4, fixed_abs, tag = 'smem constant byte address 0x4 - core index']
  #allocation1 [shape = 'u32[144,128]{1,0:T(1,128)}', space=vmem, size = 0x12000, scoped, tag = 'internal scratch']
  %s0 = inlined_call_operand.vmem [shape: bf16[1,5,5,12], index: 0, kind: input, shape index: {}]
  %s1 = inlined_call_operand.vmem [shape: bf16[2,24,16], index: 1, kind: input, shape index: {}]
  %s2 = inlined_call_operand.vmem [shape: f32[1,16], index: 2, kind: input, shape index: {}]
  %s3 = inlined_call_operand.hbm [shape: f32[1,4,4,16], index: 3, kind: output, shape index: {}]
  %s4 = sld [smem:[#allocation0]]
  $region22: #{tpu_custom_call.1} parent=0
    _
  %s6 = ssub.s32 1, %s4
  %s7 = scalar_select 0, %s6, %s4
  $region1: #{tpu_custom_call.1} parent=0
    #allocation2 [shape = 'u8[8192]{0}', space=vmem, size = 0x2000, scoped, tag = 'output window, operand 0, single buffered']
    #allocation3 [shape = 's32[1]{0}', space=sflag, size = 0x4, scoped, tag = 'scoped memory for tpu_custom_call.1']
    %8 = vsyncpa [#allocation3], 0
    // Predicated region
    $region2: #{tpu_custom_call.1} parent=1 // pred_check
      _
    $region3: #{tpu_custom_call.1} parent=1 // pred_check_branch
      %10 = sbr.rel (0) target = $region5
    $region4: #{tpu_custom_call.1} parent=1 // pred_region
      _
    $region5: #{tpu_custom_call.1} parent=1 // pred_fallthru
      _
    // Predicated region
    $region6: #{tpu_custom_call.1} parent=1 // pred_check
      _
    $region7: #{tpu_custom_call.1} parent=1 // pred_check_branch
      %12 = sbr.rel (0) target = $region9
    $region8: #{tpu_custom_call.1} parent=1 // pred_region
      _
    $region9: #{tpu_custom_call.1} parent=1 // pred_fallthru
      _
    // Predicated region
    $region10: #{tpu_custom_call.1} parent=1 // pred_check
      _
    $region11: #{tpu_custom_call.1} parent=1 // pred_check_branch
      %14 = sbr.rel (0) target = $region13
    $region12: #{tpu_custom_call.1} parent=1 // pred_region
      _
    $region13: #{tpu_custom_call.1} parent=1 // pred_fallthru
      _
    %v16 = vld [vmem:[%s2] sm:$0x1]
    %v17 = vld [vmem:[%s0] sm:$0x3]
    %v18 = vld [vmem:[%s0 + $0x4] sm:$0x3]
    %v19 = vld [vmem:[%s0 + $0x8] sm:$0x3]
    %v20 = vld [vmem:[%s0 + $0xc] sm:$0x3]
    %v21 = vld [vmem:[%s1] sm:$0xf]
    %v22 = vld [vmem:[%s1 + $0x4] sm:$0x3]
    %v23 = vld [vmem:[%s0] sm:$0x7]
    %v24 = vld [vmem:[%s0 + $0x4] sm:$0x7]
    %v25 = vld [vmem:[%s0 + $0x8] sm:$0x7]
    %v26 = vld [vmem:[%s0 + $0xc] sm:$0x7]
    %v32 = vunpack.c.l.s4 1983009808
    %v33 = vunpack.c.0.s8 %v32
    %v34 = vlaneseq
    %v35 = vshrl.u32 %v34, 7
    %v36 = vsub.s32 %v33, %v35
    %v37 = vrot.slane %v23, %v36
    %v38 = vcombine.high %v37, %v37
    %v40 = vunpack.c.l.s4 1983009808
    %v41 = vunpack.c.0.s8 %v40
    %v42 = vlaneseq
    %v43 = vshrl.u32 %v42, 7
    %v44 = vsub.s32 %v41, %v43
    %v45 = vrot.slane %v24, %v44
    %v46 = vcombine.high %v45, %v45
    %v48 = vunpack.c.l.s4 1983009808
    %v49 = vunpack.c.0.s8 %v48
    %v50 = vlaneseq
    %v51 = vshrl.u32 %v50, 7
    %v52 = vsub.s32 %v49, %v51
    %v53 = vrot.slane %v25, %v52
    %v54 = vcombine.high %v53, %v53
    %v56 = vunpack.c.l.s4 1983009808
    %v57 = vunpack.c.0.s8 %v56
    %v58 = vlaneseq
    %v59 = vshrl.u32 %v58, 7
    %v60 = vsub.s32 %v57, %v59
    %v61 = vrot.slane %v26, %v60
    %v62 = vcombine.high %v61, %v61
    %vm63 = vsmask.f32 1280
    %vm64 = vsmask.f32 3336
    %vm65 = vmor %vm63, %vm64
    %vm66 = vsmask.f32 5392
    %vm67 = vmor %vm65, %vm66
    %vm68 = vsmask.f32 7448
    %vm69 = vmor %vm67, %vm68
    %v71 = vshrl.u32 %v37, 16
    %v73 = vrot.slane %v71, 6
    %v74 = vshll.u32 %v37, 16
    %v76 = vrot.slane %v74, 7
    %v77 = vor.u32 %v73, %v76
    %v78 = vrot.slane %v77, 2
    %v80 = vshll.u32 %v38, 16
    %v82 = vrot.slane %v80, 7
    %v83 = vsel %vm69, %v78, %v82
    %v85 = vshrl.u32 %v45, 16
    %v87 = vrot.slane %v85, 6
    %v88 = vshll.u32 %v45, 16
    %v90 = vrot.slane %v88, 7
    %v91 = vor.u32 %v87, %v90
    %v92 = vrot.slane %v91, 2
    %v94 = vshll.u32 %v46, 16
    %v96 = vrot.slane %v94, 7
    %v97 = vsel %vm69, %v92, %v96
    %v99 = vshrl.u32 %v53, 16
    %v101 = vrot.slane %v99, 6
    %v102 = vshll.u32 %v53, 16
    %v104 = vrot.slane %v102, 7
    %v105 = vor.u32 %v101, %v104
    %v106 = vrot.slane %v105, 2
    %v108 = vshll.u32 %v54, 16
    %v110 = vrot.slane %v108, 7
    %v111 = vsel %vm69, %v106, %v110
    %v113 = vshrl.u32 %v61, 16
    %v115 = vrot.slane %v113, 6
    %v116 = vshll.u32 %v61, 16
    %v118 = vrot.slane %v116, 7
    %v119 = vor.u32 %v115, %v118
    %v120 = vrot.slane %v119, 2
    %v122 = vshll.u32 %v62, 16
    %v124 = vrot.slane %v122, 7
    %v125 = vsel %vm69, %v120, %v124
    %v126 = vld [vmem:[%s1 + $0x4] sm:$0xc]
    %v127 = vld [vmem:[%s1 + $0x8] sm:$0xf]
    %v128 = vcombine.low %v83, %v97
    %v129 = vcombine.low %v111, %v125
    %v131 = vunpack.c.l.s4 1983009808
    %v132 = vunpack.c.0.s8 %v131
    %v133 = vlaneseq
    %v134 = vshrl.u32 %v133, 7
    %v135 = vsub.s32 %v132, %v134
    %v136 = vrot.slane %v128, %v135
    %v138 = vunpack.c.l.s4 1983009808
    %v139 = vunpack.c.0.s8 %v138
    %v140 = vlaneseq
    %v141 = vshrl.u32 %v140, 7
    %v142 = vsub.s32 %v139, %v141
    %v143 = vrot.slane %v129, %v142
    %v144 = vcombine.low %v136, %v143
    %v147 = vunpack.c.l.b16 %v126
    %v148 = vunpack.c.l.b16 %v127
    %v149 = vpack.c.b16 %v148, %v147
    %v150 = vrot.slane %v149, 2
    %vm151 = vcmask 97280
    %v153 = vsel %vm151, %v144, 0
    %vm155 = vcmask 1045504
    %v157 = vsel %vm155, %v150, 0
    %159 = vmatprep.subr.bf16.mxu0 0
    %160 = vmatpush1.bf16.msra.mxu0 %v157
    %161 = vmatprep.subr.bf16.mxu0 0
    %162 = vmatpush1.bf16.msra.mxu0 0
    %163 = vmatprep.subr.bf16.mxu0 0
    %164 = vmatpush1.bf16.msra.mxu0 0
    %165 = vmatprep.subr.bf16.mxu0 0
    %166 = vmatpush1.bf16.msra.mxu0 0
    %167 = vmatprep.subr.bf16.mxu0 0
    %168 = vmatpush1.bf16.msra.mxu0 0
    %169 = vmatprep.subr.bf16.mxu0 0
    %170 = vmatpush1.bf16.msra.mxu0 0
    %171 = vmatprep.subr.bf16.mxu0 0
    %172 = vmatpush1.bf16.msra.mxu0 0
    %173 = vmatprep.subr.bf16.mxu0 0
    %174 = vmatpush1.bf16.msra.mxu0 0
    %175 = vmatprep.subr.bf16.mxu0 0
    %176 = vmatpush1.bf16.msra.mxu0 0
    %177 = vmatprep.subr.bf16.mxu0 0
    %178 = vmatpush1.bf16.msra.mxu0 0
    %179 = vmatprep.subr.bf16.mxu0 0
    %180 = vmatpush1.bf16.msra.mxu0 0
    %181 = vmatprep.subr.bf16.mxu0 0
    %182 = vmatpush1.bf16.msra.mxu0 0
    %183 = vmatprep.subr.bf16.mxu0 0
    %184 = vmatpush1.bf16.msra.mxu0 0
    %185 = vmatprep.subr.bf16.mxu0 0
    %186 = vmatpush1.bf16.msra.mxu0 0
    %187 = vmatprep.subr.bf16.mxu0 0
    %188 = vmatpush1.bf16.msra.mxu0 0
    %189 = vmatprep.subr.bf16.mxu0 0
    %190 = vmatpush1.bf16.msra.mxu0 0
    %191 = vmatprep.mubr.bf16.mxu0 0
    %192 = vmatmul.mubr.bf16.gmra.mrb[0].mxu0 %v153
    %v193 = vpop.f32.mrb[0].mxu0
    %v194 = vadd.f32 0.0, %v193
    %v195 = vpop.f32.mrb[0].mxu0
    %v196 = vpop.f32.mrb[0].mxu0
    %v197 = vadd.f32 0.0, %v196
    %v198 = vpop.f32.mrb[0].mxu0
    %199 = vdwg.mxu0
    %v204 = vcombine.low %v17, %v18
    %v205 = vcombine.low %v19, %v20
    %v207 = vunpack.c.l.s4 1983009808
    %v208 = vunpack.c.0.s8 %v207
    %v209 = vlaneseq
    %v210 = vshrl.u32 %v209, 7
    %v211 = vsub.s32 %v208, %v210
    %v212 = vrot.slane %v204, %v211
    %v214 = vunpack.c.l.s4 1983009808
    %v215 = vunpack.c.0.s8 %v214
    %v216 = vlaneseq
    %v217 = vshrl.u32 %v216, 7
    %v218 = vsub.s32 %v215, %v217
    %v219 = vrot.slane %v205, %v218
    %v220 = vcombine.low %v212, %v219
    %v223 = vunpack.c.l.b16 %v21
    %v224 = vunpack.c.l.b16 %v22
    %v225 = vpack.c.b16 %v224, %v223
    %v227 = vsel %vm151, %v220, 0
    %v230 = vsel %vm155, %v225, 0
    %232 = vmatprep.subr.bf16.mxu0 0
    %233 = vmatpush1.bf16.msra.mxu0 %v230
    %234 = vmatprep.subr.bf16.mxu0 0
    %235 = vmatpush1.bf16.msra.mxu0 0
    %236 = vmatprep.subr.bf16.mxu0 0
    %237 = vmatpush1.bf16.msra.mxu0 0
    %238 = vmatprep.subr.bf16.mxu0 0
    %239 = vmatpush1.bf16.msra.mxu0 0
    %240 = vmatprep.subr.bf16.mxu0 0
    %241 = vmatpush1.bf16.msra.mxu0 0
    %242 = vmatprep.subr.bf16.mxu0 0
    %243 = vmatpush1.bf16.msra.mxu0 0
    %244 = vmatprep.subr.bf16.mxu0 0
    %245 = vmatpush1.bf16.msra.mxu0 0
    %246 = vmatprep.subr.bf16.mxu0 0
    %247 = vmatpush1.bf16.msra.mxu0 0
    %248 = vmatprep.subr.bf16.mxu0 0
    %249 = vmatpush1.bf16.msra.mxu0 0
    %250 = vmatprep.subr.bf16.mxu0 0
    %251 = vmatpush1.bf16.msra.mxu0 0
    %252 = vmatprep.subr.bf16.mxu0 0
    %253 = vmatpush1.bf16.msra.mxu0 0
    %254 = vmatprep.subr.bf16.mxu0 0
    %255 = vmatpush1.bf16.msra.mxu0 0
    %256 = vmatprep.subr.bf16.mxu0 0
    %257 = vmatpush1.bf16.msra.mxu0 0
    %258 = vmatprep.subr.bf16.mxu0 0
    %259 = vmatpush1.bf16.msra.mxu0 0
    %260 = vmatprep.subr.bf16.mxu0 0
    %261 = vmatpush1.bf16.msra.mxu0 0
    %262 = vmatprep.subr.bf16.mxu0 0
    %263 = vmatpush1.bf16.msra.mxu0 0
    %264 = vmatprep.mubr.bf16.mxu0 0
    %265 = vmatmul.mubr.bf16.gmra.mrb[0].mxu0 %v227
    %v266 = vpop.f32.mrb[0].mxu0
    %v267 = vadd.f32 %v194, %v266
    %v268 = vpop.f32.mrb[0].mxu0
    %v269 = vpop.f32.mrb[0].mxu0
    %v270 = vadd.f32 %v197, %v269
    %v271 = vpop.f32.mrb[0].mxu0
    %272 = vdwg.mxu0
    %s273 = scalar_lea.vmem %s0, 4
    %v274 = vld [vmem:[%s273] sm:$0x3]
    %v275 = vld [vmem:[%s273 + $0x4] sm:$0x3]
    %v276 = vld [vmem:[%s273 + $0x8] sm:$0x3]
    %v277 = vld [vmem:[%s273 + $0xc] sm:$0x3]
    %s278 = scalar_lea.vmem %s1, 12
    %v279 = vld [vmem:[%s278] sm:$0xf]
    %v280 = vld [vmem:[%s278 + $0x4] sm:$0x3]
    %v285 = vcombine.low %v274, %v275
    %v286 = vcombine.low %v276, %v277
    %v288 = vunpack.c.l.s4 1983009808
    %v289 = vunpack.c.0.s8 %v288
    %v290 = vlaneseq
    %v291 = vshrl.u32 %v290, 7
    %v292 = vsub.s32 %v289, %v291
    %v293 = vrot.slane %v285, %v292
    %v295 = vunpack.c.l.s4 1983009808
    %v296 = vunpack.c.0.s8 %v295
    %v297 = vlaneseq
    %v298 = vshrl.u32 %v297, 7
    %v299 = vsub.s32 %v296, %v298
    %v300 = vrot.slane %v286, %v299
    %v301 = vcombine.low %v293, %v300
    %v304 = vunpack.c.l.b16 %v279
    %v305 = vunpack.c.l.b16 %v280
    %v306 = vpack.c.b16 %v305, %v304
    %v308 = vsel %vm151, %v301, 0
    %v311 = vsel %vm155, %v306, 0
    %313 = vmatprep.subr.bf16.mxu0 0
    %314 = vmatpush1.bf16.msra.mxu0 %v311
    %315 = vmatprep.subr.bf16.mxu0 0
    %316 = vmatpush1.bf16.msra.mxu0 0
    %317 = vmatprep.subr.bf16.mxu0 0
    %318 = vmatpush1.bf16.msra.mxu0 0
    %319 = vmatprep.subr.bf16.mxu0 0
    %320 = vmatpush1.bf16.msra.mxu0 0
    %321 = vmatprep.subr.bf16.mxu0 0
    %322 = vmatpush1.bf16.msra.mxu0 0
    %323 = vmatprep.subr.bf16.mxu0 0
    %324 = vmatpush1.bf16.msra.mxu0 0
    %325 = vmatprep.subr.bf16.mxu0 0
    %326 = vmatpush1.bf16.msra.mxu0 0
    %327 = vmatprep.subr.bf16.mxu0 0
    %328 = vmatpush1.bf16.msra.mxu0 0
    %329 = vmatprep.subr.bf16.mxu0 0
    %330 = vmatpush1.bf16.msra.mxu0 0
    %331 = vmatprep.subr.bf16.mxu0 0
    %332 = vmatpush1.bf16.msra.mxu0 0
    %333 = vmatprep.subr.bf16.mxu0 0
    %334 = vmatpush1.bf16.msra.mxu0 0
    %335 = vmatprep.subr.bf16.mxu0 0
    %336 = vmatpush1.bf16.msra.mxu0 0
    %337 = vmatprep.subr.bf16.mxu0 0
    %338 = vmatpush1.bf16.msra.mxu0 0
    %339 = vmatprep.subr.bf16.mxu0 0
    %340 = vmatpush1.bf16.msra.mxu0 0
    %341 = vmatprep.subr.bf16.mxu0 0
    %342 = vmatpush1.bf16.msra.mxu0 0
    %343 = vmatprep.subr.bf16.mxu0 0
    %344 = vmatpush1.bf16.msra.mxu0 0
    %345 = vmatprep.mubr.bf16.mxu0 0
    %346 = vmatmul.mubr.bf16.gmra.mrb[0].mxu0 %v308
    %v347 = vpop.f32.mrb[0].mxu0
    %v348 = vadd.f32 0.0, %v347
    %v349 = vpop.f32.mrb[0].mxu0
    %v350 = vpop.f32.mrb[0].mxu0
    %v351 = vadd.f32 0.0, %v350
    %v352 = vpop.f32.mrb[0].mxu0
    %353 = vdwg.mxu0
    %v354 = vadd.f32 %v267, %v348
    %v355 = vadd.f32 %v270, %v351
    %v356 = vld [vmem:[%s273] sm:$0x7]
    %v357 = vld [vmem:[%s273 + $0x4] sm:$0x7]
    %v358 = vld [vmem:[%s273 + $0x8] sm:$0x7]
    %v359 = vld [vmem:[%s273 + $0xc] sm:$0x7]
    %v365 = vunpack.c.l.s4 1983009808
    %v366 = vunpack.c.0.s8 %v365
    %v367 = vlaneseq
    %v368 = vshrl.u32 %v367, 7
    %v369 = vsub.s32 %v366, %v368
    %v370 = vrot.slane %v356, %v369
    %v371 = vcombine.high %v370, %v370
    %v373 = vunpack.c.l.s4 1983009808
    %v374 = vunpack.c.0.s8 %v373
    %v375 = vlaneseq
    %v376 = vshrl.u32 %v375, 7
    %v377 = vsub.s32 %v374, %v376
    %v378 = vrot.slane %v357, %v377
    %v379 = vcombine.high %v378, %v378
    %v381 = vunpack.c.l.s4 1983009808
    %v382 = vunpack.c.0.s8 %v381
    %v383 = vlaneseq
    %v384 = vshrl.u32 %v383, 7
    %v385 = vsub.s32 %v382, %v384
    %v386 = vrot.slane %v358, %v385
    %v387 = vcombine.high %v386, %v386
    %v389 = vunpack.c.l.s4 1983009808
    %v390 = vunpack.c.0.s8 %v389
    %v391 = vlaneseq
    %v392 = vshrl.u32 %v391, 7
    %v393 = vsub.s32 %v390, %v392
    %v394 = vrot.slane %v359, %v393
    %v395 = vcombine.high %v394, %v394
    %v397 = vshrl.u32 %v370, 16
    %v399 = vrot.slane %v397, 6
    %v400 = vshll.u32 %v370, 16
    %v402 = vrot.slane %v400, 7
    %v403 = vor.u32 %v399, %v402
    %v404 = vrot.slane %v403, 2
    %v406 = vshll.u32 %v371, 16
    %v408 = vrot.slane %v406, 7
    %v409 = vsel %vm69, %v404, %v408
    %v411 = vshrl.u32 %v378, 16
    %v413 = vrot.slane %v411, 6
    %v414 = vshll.u32 %v378, 16
    %v416 = vrot.slane %v414, 7
    %v417 = vor.u32 %v413, %v416
    %v418 = vrot.slane %v417, 2
    %v420 = vshll.u32 %v379, 16
    %v422 = vrot.slane %v420, 7
    %v423 = vsel %vm69, %v418, %v422
    %v425 = vshrl.u32 %v386, 16
    %v427 = vrot.slane %v425, 6
    %v428 = vshll.u32 %v386, 16
    %v430 = vrot.slane %v428, 7
    %v431 = vor.u32 %v427, %v430
    %v432 = vrot.slane %v431, 2
    %v434 = vshll.u32 %v387, 16
    %v436 = vrot.slane %v434, 7
    %v437 = vsel %vm69, %v432, %v436
    %v439 = vshrl.u32 %v394, 16
    %v441 = vrot.slane %v439, 6
    %v442 = vshll.u32 %v394, 16
    %v444 = vrot.slane %v442, 7
    %v445 = vor.u32 %v441, %v444
    %v446 = vrot.slane %v445, 2
    %v448 = vshll.u32 %v395, 16
    %v450 = vrot.slane %v448, 7
    %v451 = vsel %vm69, %v446, %v450
    %v452 = vld [vmem:[%s278 + $0x4] sm:$0xc]
    %v453 = vld [vmem:[%s278 + $0x8] sm:$0xf]
    %v454 = vcombine.low %v409, %v423
    %v455 = vcombine.low %v437, %v451
    %v457 = vunpack.c.l.s4 1983009808
    %v458 = vunpack.c.0.s8 %v457
    %v459 = vlaneseq
    %v460 = vshrl.u32 %v459, 7
    %v461 = vsub.s32 %v458, %v460
    %v462 = vrot.slane %v454, %v461
    %v464 = vunpack.c.l.s4 1983009808
    %v465 = vunpack.c.0.s8 %v464
    %v466 = vlaneseq
    %v467 = vshrl.u32 %v466, 7
    %v468 = vsub.s32 %v465, %v467
    %v469 = vrot.slane %v455, %v468
    %v470 = vcombine.low %v462, %v469
    %v473 = vunpack.c.l.b16 %v452
    %v474 = vunpack.c.l.b16 %v453
    %v475 = vpack.c.b16 %v474, %v473
    %v476 = vrot.slane %v475, 2
    %v478 = vsel %vm151, %v470, 0
    %v481 = vsel %vm155, %v476, 0
    %483 = vmatprep.subr.bf16.mxu0 0
    %484 = vmatpush1.bf16.msra.mxu0 %v481
    %485 = vmatprep.subr.bf16.mxu0 0
    %486 = vmatpush1.bf16.msra.mxu0 0
    %487 = vmatprep.subr.bf16.mxu0 0
    %488 = vmatpush1.bf16.msra.mxu0 0
    %489 = vmatprep.subr.bf16.mxu0 0
    %490 = vmatpush1.bf16.msra.mxu0 0
    %491 = vmatprep.subr.bf16.mxu0 0
    %492 = vmatpush1.bf16.msra.mxu0 0
    %493 = vmatprep.subr.bf16.mxu0 0
    %494 = vmatpush1.bf16.msra.mxu0 0
    %495 = vmatprep.subr.bf16.mxu0 0
    %496 = vmatpush1.bf16.msra.mxu0 0
    %497 = vmatprep.subr.bf16.mxu0 0
    %498 = vmatpush1.bf16.msra.mxu0 0
    %499 = vmatprep.subr.bf16.mxu0 0
    %500 = vmatpush1.bf16.msra.mxu0 0
    %501 = vmatprep.subr.bf16.mxu0 0
    %502 = vmatpush1.bf16.msra.mxu0 0
    %503 = vmatprep.subr.bf16.mxu0 0
    %504 = vmatpush1.bf16.msra.mxu0 0
    %505 = vmatprep.subr.bf16.mxu0 0
    %506 = vmatpush1.bf16.msra.mxu0 0
    %507 = vmatprep.subr.bf16.mxu0 0
    %508 = vmatpush1.bf16.msra.mxu0 0
    %509 = vmatprep.subr.bf16.mxu0 0
    %510 = vmatpush1.bf16.msra.mxu0 0
    %511 = vmatprep.subr.bf16.mxu0 0
    %512 = vmatpush1.bf16.msra.mxu0 0
    %513 = vmatprep.subr.bf16.mxu0 0
    %514 = vmatpush1.bf16.msra.mxu0 0
    %515 = vmatprep.mubr.bf16.mxu0 0
    %516 = vmatmul.mubr.bf16.gmra.mrb[0].mxu0 %v478
    %v517 = vpop.f32.mrb[0].mxu0
    %v518 = vadd.f32 0.0, %v517
    %v519 = vpop.f32.mrb[0].mxu0
    %v520 = vpop.f32.mrb[0].mxu0
    %v521 = vadd.f32 0.0, %v520
    %v522 = vpop.f32.mrb[0].mxu0
    %523 = vdwg.mxu0
    %v524 = vadd.f32 %v354, %v518
    %v525 = vadd.f32 %v355, %v521
    %v527 = vlaneseq
    %v528 = vshrl.u32 %v527, 7
    %v529 = vsub.s32 0, %v528
    %v530 = vrot.slane %v16, %v529
    %v532 = vadd.f32 %v524, %v530
    %v533 = vadd.f32 %v525, %v530
    %v534 = vmax.f32 %v532, 0.0
    %v535 = vmax.f32 %v533, 0.0
    %v538 = vcombine.high %v534, %v534
    %v539 = vcombine.high %v535, %v535
    %vm542 = vcmask 125952
    %543 = vst.msk [vmem:[#allocation2] sm:$0xf] %vm542, %v534
    %544 = vst.msk [vmem:[#allocation2 + $0x4] sm:$0xf] %vm542, %v538
    %545 = vst.msk [vmem:[#allocation2 + $0x8] sm:$0xf] %vm542, %v535
    %546 = vst.msk [vmem:[#allocation2 + $0xc] sm:$0xf] %vm542, %v539
    // Predicated region
    $region14: #{tpu_custom_call.1} parent=1 // pred_check
      _
    $region15: #{tpu_custom_call.1} parent=1 // pred_check_branch
      %548 = sbr.rel (0) target = $region17
    $region16: #{tpu_custom_call.1} parent=1 // pred_region
      %s550 = ssub.s32 256, 256
      %551 = vsyncadd [#allocation3], %s550
      %s552 = sshll.u32 [#allocation2], 4
      %s553 = int_to_ptr.vmem [resolvable:$true] %s552
      %558 = dma.vmem_to_hbm [thread:$0]  %s553, 256, %s3, [#allocation3], 64, 64, 4
    $region17: #{tpu_custom_call.1} parent=1 // pred_fallthru
      _
    // Predicated region
    $region18: #{tpu_custom_call.1} parent=1 // pred_check
      _
    $region19: #{tpu_custom_call.1} parent=1 // pred_check_branch
      %560 = sbr.rel (0) target = $region21
    $region20: #{tpu_custom_call.1} parent=1 // pred_region
      %561 = dma.done [#allocation3], 256
    $region21: #{tpu_custom_call.1} parent=1 // pred_fallthru
      _
    %562 = vsyncpa [#allocation3], 1

</llo_original>
